<compile_context>
chip_gen: v7x
topology: tpu7x:2x2x1
jax: 0.10.0
libtpu: 0.0.40
codegen_flags: <defaults>
</compile_context>

<pallas_src>
import jax
import jax.numpy as jnp
from jax.experimental import pallas as pl
from jax.experimental.pallas import tpu as pltpu


_SUBLANES = 8
_SPLIT_BYTES = 4 * 1024 * 1024   # only force >=2 grid steps above this much traffic


def _cdiv(a, b):
    return -(-a // b)


def _round_up(x, m):
    return _cdiv(x, m) * m


def _vmem_budgets():
    """(tile_budget_bytes, vmem_limit_bytes) — generation-aware, v7x-safe fallback."""
    try:
        cap = int(pltpu.get_tpu_info().vmem_capacity_bytes)
    except Exception:
        cap = 64 * 1024 * 1024                      # v7x per-TensorCore VMEM (smallest)
    tile_budget = min(cap // 3, 32 * 1024 * 1024)   # ~21 MiB on v7x, 32 MiB on v5e/v6e
    vmem_limit = min((cap * 3) // 4, 96 * 1024 * 1024)  # 48 MiB on v7x, 96 MiB v5e/v6e
    return tile_budget, vmem_limit


def _flow_params(u, w):
    """uhat and the constant w.uhat, in float32 (matches the PyTorch module)."""
    u32 = u.astype(jnp.float32)
    w32 = w.astype(jnp.float32)
    uw = jnp.sum(u32 * w32)
    muw = -1.0 + jax.nn.softplus(uw)
    uhat = u32 + (muw - uw) * w32 / jnp.sum(w32 ** 2)
    return uhat, jnp.sum(w32 * uhat)


def _planar_kernel(scal_ref, z_ref, w_col_ref, uhat_ref, fz_ref, ld_ref):
    """One (tb, F) batch tile.  scal_ref = [b, w.uhat] in SMEM."""
    z = z_ref[...].astype(jnp.float32)                                # (tb, F)
    # Row reduce on the (otherwise idle) MXU; HIGHEST keeps f32 accuracy.
    zwb = jnp.dot(z, w_col_ref[...],
                  precision=jax.lax.Precision.HIGHEST,
                  preferred_element_type=jnp.float32) + scal_ref[0]   # (tb, 1)
    t = jnp.tanh(zwb)                                                 # (tb, 1)  EUP
    fz_ref[...] = (z + uhat_ref[...] * t).astype(fz_ref.dtype)        # (tb, F)
    # psi @ uhat == (1 - t^2) * (w . uhat); the reduce is a hoisted constant.
    psi_u = (1.0 - t * t) * scal_ref[1]                               # (tb, 1)
    ld_ref[...] = jnp.log(jnp.abs(1.0 + psi_u) + 1e-8)                # (tb, 1) f32


def _choose_tb(batch, feats, itemsize):
    tile_budget, _ = _vmem_budgets()
    # VMEM bytes per batch row: double-buffered z-in + f_z-out tiles (input dtype)
    # plus the in-kernel f32 working copies (z cast + f_z before the store cast).
    per_row = 2 * 2 * feats * itemsize + 2 * 4 * feats
    cap = max(_SUBLANES, (tile_budget // per_row) // _SUBLANES * _SUBLANES)
    n_steps = _cdiv(batch, cap)
    # >=2 (even) steps so the "parallel" grid axis shards across v7x's two
    # TensorCores; skip for tiny problems where per-step overhead would dominate.
    if 2 * batch * feats * itemsize >= _SPLIT_BYTES and batch >= 2 * _SUBLANES:
        n_steps = max(n_steps, 2)
        n_steps += n_steps % 2
    tb = _round_up(_cdiv(batch, n_steps), _SUBLANES)          # balanced steps
    return min(tb, _round_up(batch, _SUBLANES))


def planar_normalizing_flow(z, u, w, b, *, tb=None):
    """Pallas implementation of PlanarNormalizingFlow.forward.

    z: (batch, features); u, w: (features,); b: (1,)
    returns (f_z, logdet_jacobian) with shapes (batch, features), (batch,).
    """
    batch, feats = z.shape
    f32 = jnp.float32

    # Parameter "glue" (tiny, plain JAX): uhat plus the hoisted scalars [b, w.uhat].
    uhat, w_dot_uhat = _flow_params(u, w)
    w_col = w.astype(f32).reshape(feats, 1)
    uhat_row = uhat.reshape(1, feats)
    scalars = jnp.stack([jnp.asarray(b, f32).reshape(-1)[0], w_dot_uhat])

    itemsize = int(jnp.dtype(z.dtype).itemsize)
    if tb is None:
        tb = _choose_tb(batch, feats, itemsize)
    else:
        tb = max(_SUBLANES, _round_up(int(tb), _SUBLANES))
        tb = min(tb, _round_up(batch, _SUBLANES))

    grid = (_cdiv(batch, tb),)          # ragged last block: no pad, no output slices
    _, vmem_limit = _vmem_budgets()

    fz, ld = pl.pallas_call(
        _planar_kernel,
        out_shape=(jax.ShapeDtypeStruct((batch, feats), z.dtype),
                   jax.ShapeDtypeStruct((batch, 1), f32)),
        grid=grid,
        in_specs=[
            pl.BlockSpec(memory_space=pltpu.MemorySpace.SMEM),    # [b, w.uhat]
            pl.BlockSpec((tb, feats), lambda i: (i, 0)),          # z tile
            pl.BlockSpec((feats, 1), lambda i: (0, 0)),           # w column (MXU RHS)
            pl.BlockSpec((1, feats), lambda i: (0, 0)),           # uhat row (broadcast)
        ],
        out_specs=(pl.BlockSpec((tb, feats), lambda i: (i, 0)),
                   pl.BlockSpec((tb, 1), lambda i: (i, 0))),
        compiler_params=pltpu.CompilerParams(
            dimension_semantics=("parallel",),
            vmem_limit_bytes=vmem_limit,
        ),
    )(scalars, z, w_col, uhat_row)

    return fz, ld.reshape(batch)


def _reference(z, u, w, b):
    z32 = z.astype(jnp.float32)
    uhat, w_dot_uhat = _flow_params(u, w)
    zwb = jnp.sum(z32 * w.astype(jnp.float32)[None, :], axis=-1) + jnp.asarray(b)[0]
    t = jnp.tanh(zwb)
    f_z = z32 + uhat[None, :] * t[:, None]
    psi_u = (1.0 - t ** 2) * w_dot_uhat
    logdet = jnp.log(jnp.abs(1.0 + psi_u) + 1e-8)
    return f_z, logdet


if __name__ == "__main__":
    key = jax.random.PRNGKey(0)

    # --- Test 1: module-sized problem (single block, F < 128) -------------------
    batch, features = 8, 32
    kz, ku, kw = jax.random.split(key, 3)
    z = jax.random.normal(kz, (batch, features), dtype=jnp.float32)
    u = jax.random.normal(ku, (features,), dtype=jnp.float32)
    w = jax.random.normal(kw, (features,), dtype=jnp.float32)
    b = jnp.ones((1,), dtype=jnp.float32)

    f_z, logdet = planar_normalizing_flow(z, u, w, b)
    jax.block_until_ready((f_z, logdet))
    f_ref, ld_ref = _reference(z, u, w, b)
    assert f_z.shape == (batch, features) and logdet.shape == (batch,)
    assert jnp.allclose(f_z, f_ref, atol=1e-4, rtol=1e-4)
    assert jnp.allclose(logdet, ld_ref, atol=1e-4, rtol=1e-4)

    # --- Test 2: multi-step tiled path with a RAGGED last block (no padding) ----
    batch2, features2 = 1000, 256
    kz2, ku2, kw2 = jax.random.split(jax.random.PRNGKey(1), 3)
    z2 = 0.02 * jax.random.normal(kz2, (batch2, features2), dtype=jnp.float32)
    u2 = jax.random.normal(ku2, (features2,), dtype=jnp.float32)
    w2 = jax.random.normal(kw2, (features2,), dtype=jnp.float32)
    b2 = 3.0 * jnp.ones((1,), dtype=jnp.float32)

    f_z2, logdet2 = planar_normalizing_flow(z2, u2, w2, b2, tb=384)  # grid=(3,), tail=232
    jax.block_until_ready((f_z2, logdet2))
    f_ref2, ld_ref2 = _reference(z2, u2, w2, b2)
    assert f_z2.shape == (batch2, features2) and logdet2.shape == (batch2,)
    assert jnp.allclose(f_z2, f_ref2, atol=1e-4, rtol=1e-4)
    assert jnp.allclose(logdet2, ld_ref2, atol=1e-4, rtol=1e-4)

    # --- Test 3: auto tile selection triggering the >=2-step (dual-TC) split ----
    batch3, features3 = 4096, 128
    kz3, ku3, kw3 = jax.random.split(jax.random.PRNGKey(2), 3)
    z3 = 0.02 * jax.random.normal(kz3, (batch3, features3), dtype=jnp.float32)
    u3 = jax.random.normal(ku3, (features3,), dtype=jnp.float32)
    w3 = jax.random.normal(kw3, (features3,), dtype=jnp.float32)
    b3 = 3.0 * jnp.ones((1,), dtype=jnp.float32)

    f_z3, logdet3 = planar_normalizing_flow(z3, u3, w3, b3)          # auto: grid=(2,)
    jax.block_until_ready((f_z3, logdet3))
    f_ref3, ld_ref3 = _reference(z3, u3, w3, b3)
    assert f_z3.shape == (batch3, features3) and logdet3.shape == (batch3,)
    assert jnp.allclose(f_z3, f_ref3, atol=1e-4, rtol=1e-4)
    assert jnp.allclose(logdet3, ld_ref3, atol=1e-4, rtol=1e-4)

    print("KERNEL_OK")
</pallas_src>

<mosaic_0001>
module attributes {stable_mosaic.version = 11 : i64} {
  func.func @_planar_kernel(%arg0: i32, %arg1: memref<2xf32, #tpu.memory_space<smem>>, %arg2: memref<8x32xf32, #tpu.memory_space<vmem>>, %arg3: memref<32x1xf32, #tpu.memory_space<vmem>>, %arg4: memref<1x32xf32, #tpu.memory_space<vmem>>, %arg5: memref<8x32xf32, #tpu.memory_space<vmem>>, %arg6: memref<8x1xf32, #tpu.memory_space<vmem>>) attributes {dimension_semantics = [#tpu.dimension_semantics<parallel>], iteration_bounds = array<i64: 1>, scalar_prefetch = 0 : i64, scratch_operands = 0 : i64, tpu.core_type = #tpu.core_type<tc>, window_params = [{transform_indices = @transform_0, window_bounds = array<i64: 2>}, {transform_indices = @transform_1, window_bounds = array<i64: 8, 32>}, {pipeline_mode = #tpu.pipeline_mode<synchronous>, transform_indices = @transform_2, window_bounds = array<i64: 32, 1>}, {pipeline_mode = #tpu.pipeline_mode<synchronous>, transform_indices = @transform_3, window_bounds = array<i64: 1, 32>}, {transform_indices = @transform_4, window_bounds = array<i64: 8, 32>}, {transform_indices = @transform_5, window_bounds = array<i64: 8, 1>}]} {
    %c0 = arith.constant 0 : index
    %c0_0 = arith.constant 0 : index
    %0 = vector.load %arg2[%c0, %c0_0] : memref<8x32xf32, #tpu.memory_space<vmem>>, vector<8x32xf32>
    %c0_1 = arith.constant 0 : index
    %c0_2 = arith.constant 0 : index
    %1 = vector.load %arg3[%c0_1, %c0_2] : memref<32x1xf32, #tpu.memory_space<vmem>>, vector<32x1xf32>
    %cst = arith.constant dense<0.000000e+00> : vector<8x1xf32>
    %2 = tpu.matmul %0, %1, %cst {dimension_numbers = #tpu.dot_dimension_numbers<[1], [0], [0], [1], [0, 0, 1, 1], [], []>, precision = #tpu.contract_precision<fp32>} : vector<8x32xf32>, vector<32x1xf32>, vector<8x1xf32> -> vector<8x1xf32>
    %c0_3 = arith.constant 0 : index
    %3 = memref.load %arg1[%c0_3] : memref<2xf32, #tpu.memory_space<smem>>
    %4 = vector.broadcast %3 : f32 to vector<8x1xf32>
    %5 = arith.addf %2, %4 : vector<8x1xf32>
    %6 = math.tanh %5 : vector<8x1xf32>
    %c0_4 = arith.constant 0 : index
    %c0_5 = arith.constant 0 : index
    %7 = vector.load %arg4[%c0_4, %c0_5] : memref<1x32xf32, #tpu.memory_space<vmem>>, vector<1x32xf32>
    %8 = vector.broadcast %7 : vector<1x32xf32> to vector<8x32xf32>
    %9 = vector.broadcast %6 : vector<8x1xf32> to vector<8x32xf32>
    %10 = arith.mulf %8, %9 : vector<8x32xf32>
    %11 = arith.addf %0, %10 : vector<8x32xf32>
    %c0_6 = arith.constant 0 : index
    %c0_7 = arith.constant 0 : index
    %12 = vector.load %arg5[%c0_6, %c0_7] : memref<8x32xf32, #tpu.memory_space<vmem>>, vector<8x32xf32>
    tpu.vector_store %arg5[%c0_6, %c0_7], %11 {strides = array<i32>} : memref<8x32xf32, #tpu.memory_space<vmem>>, vector<8x32xf32>,
    %13 = arith.mulf %6, %6 : vector<8x1xf32>
    %cst_8 = arith.constant 1.000000e+00 : f32
    %14 = vector.broadcast %cst_8 : f32 to vector<8x1xf32>
    %15 = arith.subf %14, %13 : vector<8x1xf32>
    %c1 = arith.constant 1 : index
    %16 = memref.load %arg1[%c1] : memref<2xf32, #tpu.memory_space<smem>>
    %17 = vector.broadcast %16 : f32 to vector<8x1xf32>
    %18 = arith.mulf %15, %17 : vector<8x1xf32>
    %cst_9 = arith.constant 1.000000e+00 : f32
    %19 = vector.broadcast %cst_9 : f32 to vector<8x1xf32>
    %20 = arith.addf %19, %18 : vector<8x1xf32>
    %21 = math.absf %20 : vector<8x1xf32>
    %cst_10 = arith.constant 9.99999993E-9 : f32
    %22 = vector.broadcast %cst_10 : f32 to vector<8x1xf32>
    %23 = arith.addf %21, %22 : vector<8x1xf32>
    %24 = math.log %23 : vector<8x1xf32>
    %c0_11 = arith.constant 0 : index
    %c0_12 = arith.constant 0 : index
    %25 = vector.load %arg6[%c0_11, %c0_12] : memref<8x1xf32, #tpu.memory_space<vmem>>, vector<8x1xf32>
    tpu.vector_store %arg6[%c0_11, %c0_12], %24 {strides = array<i32>} : memref<8x1xf32, #tpu.memory_space<vmem>>, vector<8x1xf32>,
    return
  }
  func.func @transform_0(%arg0: i32) -> i32 {
    %c0_i32 = arith.constant 0 : i32
    %c0_i32_0 = arith.constant 0 : i32
    return %c0_i32 : i32
  }
  func.func @transform_1(%arg0: i32) -> (i32, i32) {
    %c0_i32 = arith.constant 0 : i32
    %c0_i32_0 = arith.constant 0 : i32
    return %arg0, %c0_i32 : i32, i32
  }
  func.func @transform_2(%arg0: i32) -> (i32, i32) {
    %c0_i32 = arith.constant 0 : i32
    %c0_i32_0 = arith.constant 0 : i32
    %c0_i32_1 = arith.constant 0 : i32
    return %c0_i32, %c0_i32_0 : i32, i32
  }
  func.func @transform_3(%arg0: i32) -> (i32, i32) {
    %c0_i32 = arith.constant 0 : i32
    %c0_i32_0 = arith.constant 0 : i32
    %c0_i32_1 = arith.constant 0 : i32
    return %c0_i32, %c0_i32_0 : i32, i32
  }
  func.func @transform_4(%arg0: i32) -> (i32, i32) {
    %c0_i32 = arith.constant 0 : i32
    %c0_i32_0 = arith.constant 0 : i32
    return %arg0, %c0_i32 : i32, i32
  }
  func.func @transform_5(%arg0: i32) -> (i32, i32) {
    %c0_i32 = arith.constant 0 : i32
    %c0_i32_0 = arith.constant 0 : i32
    return %arg0, %c0_i32 : i32, i32
  }
}

</mosaic_0001>

<llo_original>
// kernel: tpu_custom_call.1
$region0: #{tpu_custom_call.1}
  #allocation0 [shape = 'u32[]', space=smem, size = 0x4, offset = 0x4, fixed_abs, tag = 'smem constant byte address 0x4 - core index']
  #allocation1 [shape = 'u32[144,128]{1,0:T(1,128)}', space=vmem, size = 0x12000, scoped, tag = 'internal scratch']
  %s0 = inlined_call_operand.vmem [shape: f32[2], index: 0, kind: input, shape index: {}]
  %s1 = inlined_call_operand.vmem [shape: f32[8,32], index: 1, kind: input, shape index: {}]
  %s2 = inlined_call_operand.vmem [shape: f32[32,1], index: 2, kind: input, shape index: {}]
  %s3 = inlined_call_operand.vmem [shape: f32[1,32], index: 3, kind: input, shape index: {}]
  %s4 = inlined_call_operand.hbm [shape: f32[8,32], index: 4, kind: output, shape index: {0}]
  %s5 = inlined_call_operand.vmem [shape: f32[8,1], index: 5, kind: output, shape index: {1}]
  %6 = xla_tuple %s4, %s5
  %s7 = sld [smem:[#allocation0]]
  $region38: #{tpu_custom_call.1} parent=0
    _
  %s9 = ssub.s32 1, %s7
  %s10 = scalar_select 0, %s9, %s7
  $region1: #{tpu_custom_call.1} parent=0
    #allocation2 [shape = 'u8[512]{0}', space=smem, size = 0x200, scoped, tag = 'input window, operand 0, single buffered']
    #allocation3 [shape = 's32[1]{0}', space=sflag, size = 0x4, scoped, tag = 'scoped memory for tpu_custom_call.1']
    #allocation4 [shape = 's32[1]{0}', space=sflag, size = 0x4, scoped, tag = 'scoped memory for tpu_custom_call.1']
    #allocation5 [shape = 'u8[4096]{0}', space=vmem, size = 0x1000, scoped, tag = 'output window, operand 0, single buffered']
    %11 = vsyncpa [#allocation4], 0
    %12 = vsyncpa [#allocation3], 0
    // Predicated region
    $region2: #{tpu_custom_call.1} parent=1 // pred_check
      _
    $region3: #{tpu_custom_call.1} parent=1 // pred_check_branch
      %14 = sbr.rel (0) target = $region5
    $region4: #{tpu_custom_call.1} parent=1 // pred_region
      %s16 = ssub.s32 16, 16
      %17 = vsyncadd [#allocation4], %s16
      %s19 = sshll.u32 %s0, 4
      %s20 = int_to_ptr.vmem [resolvable:$true] %s19
      %22 = dma.vmem_to_smem %s20, 16, [#allocation2], [#allocation4]
    $region5: #{tpu_custom_call.1} parent=1 // pred_fallthru
      _
    // Predicated region
    $region6: #{tpu_custom_call.1} parent=1 // pred_check
      _
    $region7: #{tpu_custom_call.1} parent=1 // pred_check_branch
      %24 = sbr.rel (0) target = $region9
    $region8: #{tpu_custom_call.1} parent=1 // pred_region
      _
    $region9: #{tpu_custom_call.1} parent=1 // pred_fallthru
      _
    // Predicated region
    $region10: #{tpu_custom_call.1} parent=1 // pred_check
      _
    $region11: #{tpu_custom_call.1} parent=1 // pred_check_branch
      %26 = sbr.rel (0) target = $region13
    $region12: #{tpu_custom_call.1} parent=1 // pred_region
      _
    $region13: #{tpu_custom_call.1} parent=1 // pred_fallthru
      _
    // Predicated region
    $region14: #{tpu_custom_call.1} parent=1 // pred_check
      _
    $region15: #{tpu_custom_call.1} parent=1 // pred_check_branch
      %28 = sbr.rel (0) target = $region17
    $region16: #{tpu_custom_call.1} parent=1 // pred_region
      _
    $region17: #{tpu_custom_call.1} parent=1 // pred_fallthru
      _
    // Predicated region
    $region18: #{tpu_custom_call.1} parent=1 // pred_check
      _
    $region19: #{tpu_custom_call.1} parent=1 // pred_check_branch
      %30 = sbr.rel (0) target = $region21
    $region20: #{tpu_custom_call.1} parent=1 // pred_region
      %31 = dma.done [#allocation4], 16
    $region21: #{tpu_custom_call.1} parent=1 // pred_fallthru
      _
    %32 = sfence
    %v33 = vld [vmem:[%s1] sm:$0xff]
    %v34 = vld [vmem:[%s2] sm:$0xff]
    %v35 = vld [vmem:[%s2 + $0x8] sm:$0xff]
    %v36 = vld [vmem:[%s2 + $0x10] sm:$0xff]
    %v37 = vld [vmem:[%s2 + $0x18] sm:$0xff]
    %s38 = sld [smem:[#allocation2]]
    %v39 = vstv %s38
    %vm40 = vcmask 261120
    %v42 = vsel %vm40, %v33, 0
    %44 = vmatprep.subr.mxu0 0.0
    %v45 = vand.u32 %v34, 4294901760
    %46 = vmatpush1.msra.mxu0 %v45
    %47 = vmatprep.subr.mxu0 0.0
    %v48 = vand.u32 %v35, 4294901760
    %49 = vmatpush1.msra.mxu0 %v48
    %50 = vmatprep.subr.mxu0 0.0
    %v51 = vand.u32 %v36, 4294901760
    %52 = vmatpush1.msra.mxu0 %v51
    %53 = vmatprep.subr.mxu0 0.0
    %v54 = vand.u32 %v37, 4294901760
    %55 = vmatpush1.msra.mxu0 %v54
    %56 = vmatprep.subr.mxu0 0.0
    %57 = vmatpush1.msra.mxu0 0.0
    %58 = vmatprep.subr.mxu0 0.0
    %59 = vmatpush1.msra.mxu0 0.0
    %60 = vmatprep.subr.mxu0 0.0
    %61 = vmatpush1.msra.mxu0 0.0
    %62 = vmatprep.subr.mxu0 0.0
    %63 = vmatpush1.msra.mxu0 0.0
    %64 = vmatprep.subr.mxu0 0.0
    %65 = vmatpush1.msra.mxu0 0.0
    %66 = vmatprep.subr.mxu0 0.0
    %67 = vmatpush1.msra.mxu0 0.0
    %68 = vmatprep.subr.mxu0 0.0
    %69 = vmatpush1.msra.mxu0 0.0
    %70 = vmatprep.subr.mxu0 0.0
    %71 = vmatpush1.msra.mxu0 0.0
    %72 = vmatprep.subr.mxu0 0.0
    %73 = vmatpush1.msra.mxu0 0.0
    %74 = vmatprep.subr.mxu0 0.0
    %75 = vmatpush1.msra.mxu0 0.0
    %76 = vmatprep.subr.mxu0 0.0
    %77 = vmatpush1.msra.mxu0 0.0
    %78 = vmatprep.subr.mxu0 0.0
    %79 = vmatpush1.msra.mxu0 0.0
    %80 = vmatprep.subr.mxu0 0.0
    %81 = vmatpush1.msra.mxu0 0.0
    %82 = vmatprep.subr.mxu0 0.0
    %83 = vmatpush1.msra.mxu0 0.0
    %84 = vmatprep.subr.mxu0 0.0
    %85 = vmatpush1.msra.mxu0 0.0
    %86 = vmatprep.subr.mxu0 0.0
    %87 = vmatpush1.msra.mxu0 0.0
    %88 = vmatprep.subr.mxu0 0.0
    %89 = vmatpush1.msra.mxu0 0.0
    %90 = vmatprep.subr.mxu0 0.0
    %91 = vmatpush1.msra.mxu0 0.0
    %92 = vmatprep.subr.mxu0 0.0
    %93 = vmatpush1.msra.mxu0 0.0
    %94 = vmatprep.subr.mxu0 0.0
    %95 = vmatpush1.msra.mxu0 0.0
    %96 = vmatprep.subr.mxu0 0.0
    %97 = vmatpush1.msra.mxu0 0.0
    %98 = vmatprep.subr.mxu0 0.0
    %99 = vmatpush1.msra.mxu0 0.0
    %100 = vmatprep.subr.mxu0 0.0
    %101 = vmatpush1.msra.mxu0 0.0
    %102 = vmatprep.subr.mxu0 0.0
    %103 = vmatpush1.msra.mxu0 0.0
    %104 = vmatprep.subr.mxu0 0.0
    %105 = vmatpush1.msra.mxu0 0.0
    %106 = vmatprep.subr.mxu0 0.0
    %107 = vmatpush1.msra.mxu0 0.0
    %108 = vmatprep.subr.mxu0 0.0
    %109 = vmatpush1.msra.mxu0 0.0
    %110 = vmatprep.subr.mxu0 0.0
    %111 = vmatpush1.msra.mxu0 0.0
    %112 = vmatprep.mubr.f32.mxu0 0.0
    %v113 = vand.u32 %v42, 4294901760
    %v114 = vsub.f32 %v42, %v113
    %v115 = vand.u32 %v114, 4294901760
    %v116 = vsub.f32 %v114, %v115
    %v117 = vand.u32 %v116, 4294901760
    %118 = vmatmul.mubr.f32.gmra.mrb[0].mxu0 %v117
    %v119 = vpop.f32.mrb[0].mxu0
    %v120 = vadd.f32 %v39, %v119
    %v121 = vpop.f32.mrb[0].mxu0
    %122 = vdwg.mxu0
    %123 = vmatprep.subr.mxu0 0.0
    %v124 = vand.u32 %v34, 4294901760
    %v125 = vsub.f32 %v34, %v124
    %v126 = vand.u32 %v125, 4294901760
    %v127 = vsub.f32 %v125, %v126
    %v128 = vand.u32 %v127, 4294901760
    %129 = vmatpush1.msra.mxu0 %v128
    %130 = vmatprep.subr.mxu0 0.0
    %v131 = vand.u32 %v35, 4294901760
    %v132 = vsub.f32 %v35, %v131
    %v133 = vand.u32 %v132, 4294901760
    %v134 = vsub.f32 %v132, %v133
    %v135 = vand.u32 %v134, 4294901760
    %136 = vmatpush1.msra.mxu0 %v135
    %137 = vmatprep.subr.mxu0 0.0
    %v138 = vand.u32 %v36, 4294901760
    %v139 = vsub.f32 %v36, %v138
    %v140 = vand.u32 %v139, 4294901760
    %v141 = vsub.f32 %v139, %v140
    %v142 = vand.u32 %v141, 4294901760
    %143 = vmatpush1.msra.mxu0 %v142
    %144 = vmatprep.subr.mxu0 0.0
    %v145 = vand.u32 %v37, 4294901760
    %v146 = vsub.f32 %v37, %v145
    %v147 = vand.u32 %v146, 4294901760
    %v148 = vsub.f32 %v146, %v147
    %v149 = vand.u32 %v148, 4294901760
    %150 = vmatpush1.msra.mxu0 %v149
    %151 = vmatprep.subr.mxu0 0.0
    %152 = vmatpush1.msra.mxu0 0.0
    %153 = vmatprep.subr.mxu0 0.0
    %154 = vmatpush1.msra.mxu0 0.0
    %155 = vmatprep.subr.mxu0 0.0
    %156 = vmatpush1.msra.mxu0 0.0
    %157 = vmatprep.subr.mxu0 0.0
    %158 = vmatpush1.msra.mxu0 0.0
    %159 = vmatprep.subr.mxu0 0.0
    %160 = vmatpush1.msra.mxu0 0.0
    %161 = vmatprep.subr.mxu0 0.0
    %162 = vmatpush1.msra.mxu0 0.0
    %163 = vmatprep.subr.mxu0 0.0
    %164 = vmatpush1.msra.mxu0 0.0
    %165 = vmatprep.subr.mxu0 0.0
    %166 = vmatpush1.msra.mxu0 0.0
    %167 = vmatprep.subr.mxu0 0.0
    %168 = vmatpush1.msra.mxu0 0.0
    %169 = vmatprep.subr.mxu0 0.0
    %170 = vmatpush1.msra.mxu0 0.0
    %171 = vmatprep.subr.mxu0 0.0
    %172 = vmatpush1.msra.mxu0 0.0
    %173 = vmatprep.subr.mxu0 0.0
    %174 = vmatpush1.msra.mxu0 0.0
    %175 = vmatprep.subr.mxu0 0.0
    %176 = vmatpush1.msra.mxu0 0.0
    %177 = vmatprep.subr.mxu0 0.0
    %178 = vmatpush1.msra.mxu0 0.0
    %179 = vmatprep.subr.mxu0 0.0
    %180 = vmatpush1.msra.mxu0 0.0
    %181 = vmatprep.subr.mxu0 0.0
    %182 = vmatpush1.msra.mxu0 0.0
    %183 = vmatprep.subr.mxu0 0.0
    %184 = vmatpush1.msra.mxu0 0.0
    %185 = vmatprep.subr.mxu0 0.0
    %186 = vmatpush1.msra.mxu0 0.0
    %187 = vmatprep.subr.mxu0 0.0
    %188 = vmatpush1.msra.mxu0 0.0
    %189 = vmatprep.subr.mxu0 0.0
    %190 = vmatpush1.msra.mxu0 0.0
    %191 = vmatprep.subr.mxu0 0.0
    %192 = vmatpush1.msra.mxu0 0.0
    %193 = vmatprep.subr.mxu0 0.0
    %194 = vmatpush1.msra.mxu0 0.0
    %195 = vmatprep.subr.mxu0 0.0
    %196 = vmatpush1.msra.mxu0 0.0
    %197 = vmatprep.subr.mxu0 0.0
    %198 = vmatpush1.msra.mxu0 0.0
    %199 = vmatprep.subr.mxu0 0.0
    %200 = vmatpush1.msra.mxu0 0.0
    %201 = vmatprep.subr.mxu0 0.0
    %202 = vmatpush1.msra.mxu0 0.0
    %203 = vmatprep.subr.mxu0 0.0
    %204 = vmatpush1.msra.mxu0 0.0
    %205 = vmatprep.subr.mxu0 0.0
    %206 = vmatpush1.msra.mxu0 0.0
    %207 = vmatprep.mubr.f32.mxu0 0.0
    %v208 = vand.u32 %v42, 4294901760
    %209 = vmatmul.mubr.f32.gmra.mrb[0].mxu0 %v208
    %v210 = vpop.f32.mrb[0].mxu0
    %v211 = vadd.f32 %v120, %v210
    %v212 = vpop.f32.mrb[0].mxu0
    %213 = vdwg.mxu0
    %214 = vmatprep.subr.mxu0 0.0
    %v215 = vand.u32 %v34, 4294901760
    %v216 = vsub.f32 %v34, %v215
    %217 = vmatpush1.msra.mxu0 %v216
    %218 = vmatprep.subr.mxu0 0.0
    %v219 = vand.u32 %v35, 4294901760
    %v220 = vsub.f32 %v35, %v219
    %221 = vmatpush1.msra.mxu0 %v220
    %222 = vmatprep.subr.mxu0 0.0
    %v223 = vand.u32 %v36, 4294901760
    %v224 = vsub.f32 %v36, %v223
    %225 = vmatpush1.msra.mxu0 %v224
    %226 = vmatprep.subr.mxu0 0.0
    %v227 = vand.u32 %v37, 4294901760
    %v228 = vsub.f32 %v37, %v227
    %229 = vmatpush1.msra.mxu0 %v228
    %230 = vmatprep.subr.mxu0 0.0
    %231 = vmatpush1.msra.mxu0 0.0
    %232 = vmatprep.subr.mxu0 0.0
    %233 = vmatpush1.msra.mxu0 0.0
    %234 = vmatprep.subr.mxu0 0.0
    %235 = vmatpush1.msra.mxu0 0.0
    %236 = vmatprep.subr.mxu0 0.0
    %237 = vmatpush1.msra.mxu0 0.0
    %238 = vmatprep.subr.mxu0 0.0
    %239 = vmatpush1.msra.mxu0 0.0
    %240 = vmatprep.subr.mxu0 0.0
    %241 = vmatpush1.msra.mxu0 0.0
    %242 = vmatprep.subr.mxu0 0.0
    %243 = vmatpush1.msra.mxu0 0.0
    %244 = vmatprep.subr.mxu0 0.0
    %245 = vmatpush1.msra.mxu0 0.0
    %246 = vmatprep.subr.mxu0 0.0
    %247 = vmatpush1.msra.mxu0 0.0
    %248 = vmatprep.subr.mxu0 0.0
    %249 = vmatpush1.msra.mxu0 0.0
    %250 = vmatprep.subr.mxu0 0.0
    %251 = vmatpush1.msra.mxu0 0.0
    %252 = vmatprep.subr.mxu0 0.0
    %253 = vmatpush1.msra.mxu0 0.0
    %254 = vmatprep.subr.mxu0 0.0
    %255 = vmatpush1.msra.mxu0 0.0
    %256 = vmatprep.subr.mxu0 0.0
    %257 = vmatpush1.msra.mxu0 0.0
    %258 = vmatprep.subr.mxu0 0.0
    %259 = vmatpush1.msra.mxu0 0.0
    %260 = vmatprep.subr.mxu0 0.0
    %261 = vmatpush1.msra.mxu0 0.0
    %262 = vmatprep.subr.mxu0 0.0
    %263 = vmatpush1.msra.mxu0 0.0
    %264 = vmatprep.subr.mxu0 0.0
    %265 = vmatpush1.msra.mxu0 0.0
    %266 = vmatprep.subr.mxu0 0.0
    %267 = vmatpush1.msra.mxu0 0.0
    %268 = vmatprep.subr.mxu0 0.0
    %269 = vmatpush1.msra.mxu0 0.0
    %270 = vmatprep.subr.mxu0 0.0
    %271 = vmatpush1.msra.mxu0 0.0
    %272 = vmatprep.subr.mxu0 0.0
    %273 = vmatpush1.msra.mxu0 0.0
    %274 = vmatprep.subr.mxu0 0.0
    %275 = vmatpush1.msra.mxu0 0.0
    %276 = vmatprep.subr.mxu0 0.0
    %277 = vmatpush1.msra.mxu0 0.0
    %278 = vmatprep.subr.mxu0 0.0
    %279 = vmatpush1.msra.mxu0 0.0
    %280 = vmatprep.subr.mxu0 0.0
    %281 = vmatpush1.msra.mxu0 0.0
    %282 = vmatprep.subr.mxu0 0.0
    %283 = vmatpush1.msra.mxu0 0.0
    %284 = vmatprep.subr.mxu0 0.0
    %285 = vmatpush1.msra.mxu0 0.0
    %286 = vmatprep.mubr.f32.mxu0 0.0
    %v287 = vand.u32 %v42, 4294901760
    %v288 = vsub.f32 %v42, %v287
    %289 = vmatmul.mubr.f32.gmra.mrb[0].mxu0 %v288
    %v290 = vpop.f32.mrb[0].mxu0
    %v291 = vadd.f32 %v211, %v290
    %v292 = vpop.f32.mrb[0].mxu0
    %293 = vdwg.mxu0
    %294 = vmatprep.subr.mxu0 0.0
    %v295 = vand.u32 %v34, 4294901760
    %296 = vmatpush1.msra.mxu0 %v295
    %297 = vmatprep.subr.mxu0 0.0
    %v298 = vand.u32 %v35, 4294901760
    %299 = vmatpush1.msra.mxu0 %v298
    %300 = vmatprep.subr.mxu0 0.0
    %v301 = vand.u32 %v36, 4294901760
    %302 = vmatpush1.msra.mxu0 %v301
    %303 = vmatprep.subr.mxu0 0.0
    %v304 = vand.u32 %v37, 4294901760
    %305 = vmatpush1.msra.mxu0 %v304
    %306 = vmatprep.subr.mxu0 0.0
    %307 = vmatpush1.msra.mxu0 0.0
    %308 = vmatprep.subr.mxu0 0.0
    %309 = vmatpush1.msra.mxu0 0.0
    %310 = vmatprep.subr.mxu0 0.0
    %311 = vmatpush1.msra.mxu0 0.0
    %312 = vmatprep.subr.mxu0 0.0
    %313 = vmatpush1.msra.mxu0 0.0
    %314 = vmatprep.subr.mxu0 0.0
    %315 = vmatpush1.msra.mxu0 0.0
    %316 = vmatprep.subr.mxu0 0.0
    %317 = vmatpush1.msra.mxu0 0.0
    %318 = vmatprep.subr.mxu0 0.0
    %319 = vmatpush1.msra.mxu0 0.0
    %320 = vmatprep.subr.mxu0 0.0
    %321 = vmatpush1.msra.mxu0 0.0
    %322 = vmatprep.subr.mxu0 0.0
    %323 = vmatpush1.msra.mxu0 0.0
    %324 = vmatprep.subr.mxu0 0.0
    %325 = vmatpush1.msra.mxu0 0.0
    %326 = vmatprep.subr.mxu0 0.0
    %327 = vmatpush1.msra.mxu0 0.0
    %328 = vmatprep.subr.mxu0 0.0
    %329 = vmatpush1.msra.mxu0 0.0
    %330 = vmatprep.subr.mxu0 0.0
    %331 = vmatpush1.msra.mxu0 0.0
    %332 = vmatprep.subr.mxu0 0.0
    %333 = vmatpush1.msra.mxu0 0.0
    %334 = vmatprep.subr.mxu0 0.0
    %335 = vmatpush1.msra.mxu0 0.0
    %336 = vmatprep.subr.mxu0 0.0
    %337 = vmatpush1.msra.mxu0 0.0
    %338 = vmatprep.subr.mxu0 0.0
    %339 = vmatpush1.msra.mxu0 0.0
    %340 = vmatprep.subr.mxu0 0.0
    %341 = vmatpush1.msra.mxu0 0.0
    %342 = vmatprep.subr.mxu0 0.0
    %343 = vmatpush1.msra.mxu0 0.0
    %344 = vmatprep.subr.mxu0 0.0
    %345 = vmatpush1.msra.mxu0 0.0
    %346 = vmatprep.subr.mxu0 0.0
    %347 = vmatpush1.msra.mxu0 0.0
    %348 = vmatprep.subr.mxu0 0.0
    %349 = vmatpush1.msra.mxu0 0.0
    %350 = vmatprep.subr.mxu0 0.0
    %351 = vmatpush1.msra.mxu0 0.0
    %352 = vmatprep.subr.mxu0 0.0
    %353 = vmatpush1.msra.mxu0 0.0
    %354 = vmatprep.subr.mxu0 0.0
    %355 = vmatpush1.msra.mxu0 0.0
    %356 = vmatprep.subr.mxu0 0.0
    %357 = vmatpush1.msra.mxu0 0.0
    %358 = vmatprep.subr.mxu0 0.0
    %359 = vmatpush1.msra.mxu0 0.0
    %360 = vmatprep.subr.mxu0 0.0
    %361 = vmatpush1.msra.mxu0 0.0
    %362 = vmatprep.mubr.f32.mxu0 0.0
    %v363 = vand.u32 %v42, 4294901760
    %v364 = vsub.f32 %v42, %v363
    %v365 = vand.u32 %v364, 4294901760
    %366 = vmatmul.mubr.f32.gmra.mrb[0].mxu0 %v365
    %v367 = vpop.f32.mrb[0].mxu0
    %v368 = vadd.f32 %v291, %v367
    %v369 = vpop.f32.mrb[0].mxu0
    %370 = vdwg.mxu0
    %371 = vmatprep.subr.mxu0 0.0
    %v372 = vand.u32 %v34, 4294901760
    %v373 = vsub.f32 %v34, %v372
    %v374 = vand.u32 %v373, 4294901760
    %375 = vmatpush1.msra.mxu0 %v374
    %376 = vmatprep.subr.mxu0 0.0
    %v377 = vand.u32 %v35, 4294901760
    %v378 = vsub.f32 %v35, %v377
    %v379 = vand.u32 %v378, 4294901760
    %380 = vmatpush1.msra.mxu0 %v379
    %381 = vmatprep.subr.mxu0 0.0
    %v382 = vand.u32 %v36, 4294901760
    %v383 = vsub.f32 %v36, %v382
    %v384 = vand.u32 %v383, 4294901760
    %385 = vmatpush1.msra.mxu0 %v384
    %386 = vmatprep.subr.mxu0 0.0
    %v387 = vand.u32 %v37, 4294901760
    %v388 = vsub.f32 %v37, %v387
    %v389 = vand.u32 %v388, 4294901760
    %390 = vmatpush1.msra.mxu0 %v389
    %391 = vmatprep.subr.mxu0 0.0
    %392 = vmatpush1.msra.mxu0 0.0
    %393 = vmatprep.subr.mxu0 0.0
    %394 = vmatpush1.msra.mxu0 0.0
    %395 = vmatprep.subr.mxu0 0.0
    %396 = vmatpush1.msra.mxu0 0.0
    %397 = vmatprep.subr.mxu0 0.0
    %398 = vmatpush1.msra.mxu0 0.0
    %399 = vmatprep.subr.mxu0 0.0
    %400 = vmatpush1.msra.mxu0 0.0
    %401 = vmatprep.subr.mxu0 0.0
    %402 = vmatpush1.msra.mxu0 0.0
    %403 = vmatprep.subr.mxu0 0.0
    %404 = vmatpush1.msra.mxu0 0.0
    %405 = vmatprep.subr.mxu0 0.0
    %406 = vmatpush1.msra.mxu0 0.0
    %407 = vmatprep.subr.mxu0 0.0
    %408 = vmatpush1.msra.mxu0 0.0
    %409 = vmatprep.subr.mxu0 0.0
    %410 = vmatpush1.msra.mxu0 0.0
    %411 = vmatprep.subr.mxu0 0.0
    %412 = vmatpush1.msra.mxu0 0.0
    %413 = vmatprep.subr.mxu0 0.0
    %414 = vmatpush1.msra.mxu0 0.0
    %415 = vmatprep.subr.mxu0 0.0
    %416 = vmatpush1.msra.mxu0 0.0
    %417 = vmatprep.subr.mxu0 0.0
    %418 = vmatpush1.msra.mxu0 0.0
    %419 = vmatprep.subr.mxu0 0.0
    %420 = vmatpush1.msra.mxu0 0.0
    %421 = vmatprep.subr.mxu0 0.0
    %422 = vmatpush1.msra.mxu0 0.0
    %423 = vmatprep.subr.mxu0 0.0
    %424 = vmatpush1.msra.mxu0 0.0
    %425 = vmatprep.subr.mxu0 0.0
    %426 = vmatpush1.msra.mxu0 0.0
    %427 = vmatprep.subr.mxu0 0.0
    %428 = vmatpush1.msra.mxu0 0.0
    %429 = vmatprep.subr.mxu0 0.0
    %430 = vmatpush1.msra.mxu0 0.0
    %431 = vmatprep.subr.mxu0 0.0
    %432 = vmatpush1.msra.mxu0 0.0
    %433 = vmatprep.subr.mxu0 0.0
    %434 = vmatpush1.msra.mxu0 0.0
    %435 = vmatprep.subr.mxu0 0.0
    %436 = vmatpush1.msra.mxu0 0.0
    %437 = vmatprep.subr.mxu0 0.0
    %438 = vmatpush1.msra.mxu0 0.0
    %439 = vmatprep.subr.mxu0 0.0
    %440 = vmatpush1.msra.mxu0 0.0
    %441 = vmatprep.subr.mxu0 0.0
    %442 = vmatpush1.msra.mxu0 0.0
    %443 = vmatprep.subr.mxu0 0.0
    %444 = vmatpush1.msra.mxu0 0.0
    %445 = vmatprep.subr.mxu0 0.0
    %446 = vmatpush1.msra.mxu0 0.0
    %447 = vmatprep.mubr.f32.mxu0 0.0
    %v448 = vand.u32 %v42, 4294901760
    %449 = vmatmul.mubr.f32.gmra.mrb[0].mxu0 %v448
    %v450 = vpop.f32.mrb[0].mxu0
    %v451 = vadd.f32 %v368, %v450
    %v452 = vpop.f32.mrb[0].mxu0
    %453 = vdwg.mxu0
    %454 = vmatprep.subr.mxu0 0.0
    %v455 = vand.u32 %v34, 4294901760
    %456 = vmatpush1.msra.mxu0 %v455
    %457 = vmatprep.subr.mxu0 0.0
    %v458 = vand.u32 %v35, 4294901760
    %459 = vmatpush1.msra.mxu0 %v458
    %460 = vmatprep.subr.mxu0 0.0
    %v461 = vand.u32 %v36, 4294901760
    %462 = vmatpush1.msra.mxu0 %v461
    %463 = vmatprep.subr.mxu0 0.0
    %v464 = vand.u32 %v37, 4294901760
    %465 = vmatpush1.msra.mxu0 %v464
    %466 = vmatprep.subr.mxu0 0.0
    %467 = vmatpush1.msra.mxu0 0.0
    %468 = vmatprep.subr.mxu0 0.0
    %469 = vmatpush1.msra.mxu0 0.0
    %470 = vmatprep.subr.mxu0 0.0
    %471 = vmatpush1.msra.mxu0 0.0
    %472 = vmatprep.subr.mxu0 0.0
    %473 = vmatpush1.msra.mxu0 0.0
    %474 = vmatprep.subr.mxu0 0.0
    %475 = vmatpush1.msra.mxu0 0.0
    %476 = vmatprep.subr.mxu0 0.0
    %477 = vmatpush1.msra.mxu0 0.0
    %478 = vmatprep.subr.mxu0 0.0
    %479 = vmatpush1.msra.mxu0 0.0
    %480 = vmatprep.subr.mxu0 0.0
    %481 = vmatpush1.msra.mxu0 0.0
    %482 = vmatprep.subr.mxu0 0.0
    %483 = vmatpush1.msra.mxu0 0.0
    %484 = vmatprep.subr.mxu0 0.0
    %485 = vmatpush1.msra.mxu0 0.0
    %486 = vmatprep.subr.mxu0 0.0
    %487 = vmatpush1.msra.mxu0 0.0
    %488 = vmatprep.subr.mxu0 0.0
    %489 = vmatpush1.msra.mxu0 0.0
    %490 = vmatprep.subr.mxu0 0.0
    %491 = vmatpush1.msra.mxu0 0.0
    %492 = vmatprep.subr.mxu0 0.0
    %493 = vmatpush1.msra.mxu0 0.0
    %494 = vmatprep.subr.mxu0 0.0
    %495 = vmatpush1.msra.mxu0 0.0
    %496 = vmatprep.subr.mxu0 0.0
    %497 = vmatpush1.msra.mxu0 0.0
    %498 = vmatprep.subr.mxu0 0.0
    %499 = vmatpush1.msra.mxu0 0.0
    %500 = vmatprep.subr.mxu0 0.0
    %501 = vmatpush1.msra.mxu0 0.0
    %502 = vmatprep.subr.mxu0 0.0
    %503 = vmatpush1.msra.mxu0 0.0
    %504 = vmatprep.subr.mxu0 0.0
    %505 = vmatpush1.msra.mxu0 0.0
    %506 = vmatprep.subr.mxu0 0.0
    %507 = vmatpush1.msra.mxu0 0.0
    %508 = vmatprep.subr.mxu0 0.0
    %509 = vmatpush1.msra.mxu0 0.0
    %510 = vmatprep.subr.mxu0 0.0
    %511 = vmatpush1.msra.mxu0 0.0
    %512 = vmatprep.subr.mxu0 0.0
    %513 = vmatpush1.msra.mxu0 0.0
    %514 = vmatprep.subr.mxu0 0.0
    %515 = vmatpush1.msra.mxu0 0.0
    %516 = vmatprep.subr.mxu0 0.0
    %517 = vmatpush1.msra.mxu0 0.0
    %518 = vmatprep.subr.mxu0 0.0
    %519 = vmatpush1.msra.mxu0 0.0
    %520 = vmatprep.subr.mxu0 0.0
    %521 = vmatpush1.msra.mxu0 0.0
    %522 = vmatprep.mubr.f32.mxu0 0.0
    %v523 = vand.u32 %v42, 4294901760
    %524 = vmatmul.mubr.f32.gmra.mrb[0].mxu0 %v523
    %v525 = vpop.f32.mrb[0].mxu0
    %v526 = vadd.f32 %v451, %v525
    %v527 = vpop.f32.mrb[0].mxu0
    %528 = vdwg.mxu0
    %v529 = vtanh.pop %v526
    %v530 = vld [vmem:[%s3] sm:$0x1]
    %v532 = vlaneseq
    %v533 = vshrl.u32 %v532, 7
    %v534 = vsub.s32 0, %v533
    %v535 = vrot.slane %v530, %v534
    %538 = vset.pattern.permute.xlu0 0
    %539 = vperm.xlu0 %538, %v529
    %v540 = vpop.permute.xlu0 %539
    %v542 = vmul.f32 %v535, %v540
    %v543 = vadd.f32 %v33, %v542
    %544 = vst.msk [vmem:[#allocation5] sm:$0xff] %vm40, %v543
    %v545 = vmul.f32 %v529, %v529
    %v546 = vsub.f32 1.0, %v545
    %s547 = sld [smem:[#allocation2 + $0x1]]
    %v548 = vstv %s547
    %v549 = vmul.f32 %v546, %v548
    %v550 = vadd.f32 %v549, 1.0
    %v551 = vand.u32 2147483647, %v550
    %v552 = vadd.f32 %v551, 1e-08
    %v553 = vlog2.pop %v552
    %v554 = vmul.f32 %v553, 0.6931472
    %vm555 = vcmask 7168
    %556 = vst.msk [vmem:[%s5] sm:$0xff] %vm555, %v554
    // Predicated region
    $region22: #{tpu_custom_call.1} parent=1 // pred_check
      _
    $region23: #{tpu_custom_call.1} parent=1 // pred_check_branch
      %558 = sbr.rel (0) target = $region25
    $region24: #{tpu_custom_call.1} parent=1 // pred_region
      %s560 = ssub.s32 128, 128
      %561 = vsyncadd [#allocation3], %s560
      %s563 = sshll.u32 [#allocation5], 4
      %s564 = int_to_ptr.vmem [resolvable:$true] %s563
      %566 = dma.vmem_to_hbm [thread:$0]  %s564, 128, %s4, [#allocation3]
    $region25: #{tpu_custom_call.1} parent=1 // pred_fallthru
      _
    // Predicated region
    $region26: #{tpu_custom_call.1} parent=1 // pred_check
      _
    $region27: #{tpu_custom_call.1} parent=1 // pred_check_branch
      %568 = sbr.rel (0) target = $region29
    $region28: #{tpu_custom_call.1} parent=1 // pred_region
      _
    $region29: #{tpu_custom_call.1} parent=1 // pred_fallthru
      _
    // Predicated region
    $region30: #{tpu_custom_call.1} parent=1 // pred_check
      _
    $region31: #{tpu_custom_call.1} parent=1 // pred_check_branch
      %570 = sbr.rel (0) target = $region33
    $region32: #{tpu_custom_call.1} parent=1 // pred_region
      %571 = dma.done [#allocation3], 128
    $region33: #{tpu_custom_call.1} parent=1 // pred_fallthru
      _
    // Predicated region
    $region34: #{tpu_custom_call.1} parent=1 // pred_check
      _
    $region35: #{tpu_custom_call.1} parent=1 // pred_check_branch
      %573 = sbr.rel (0) target = $region37
    $region36: #{tpu_custom_call.1} parent=1 // pred_region
      _
    $region37: #{tpu_custom_call.1} parent=1 // pred_fallthru
      _
    %574 = vsyncpa [#allocation3], 1
    %575 = vsyncpa [#allocation4], 1

</llo_original>
